<compile_context>
chip_gen: v5e
topology: v5e:2x2
jax: 0.10.0
libtpu: 0.0.40
codegen_flags: <defaults>
</compile_context>

<pallas_src>
import numpy as np
import jax
import jax.numpy as jnp
from jax import lax
from jax.experimental import pallas as pl
from jax.experimental.pallas import tpu as pltpu


N_PROGRAMS = 2   # 2 = one program per TensorCore on v7x; use 1 on single-TC v5e/v6e.


# ----------------------------- in-kernel math helpers -----------------------------
def _softplus(x):
    # numerically stable softplus: one exp + one log
    return jnp.maximum(x, 0.0) + jnp.log(1.0 + jnp.exp(-jnp.abs(x)))


def _log_g(x):
    # log_g(x) = log(relu(x) + 0.5) if x >= 0 else -softplus(-x)
    return jnp.where(x >= 0.0, jnp.log(jnp.maximum(x, 0.0) + 0.5), -_softplus(-x))


# ------------------------------- fused MinGRU kernel -------------------------------
def _mingru_kernel(x_ref, xh_ref, h0_ref, w_ref, b_ref, o_ref):
    """x_ref  : (B, T, I)   full input (log_values needs every batch)
       xh_ref : (Bh, T, I)  this program's output-batch slice (for its a_star)
       h0_ref : (B, H)
       w_ref  : (I, 2H)     [linear_z.weight.T | linear_h.weight.T]
       b_ref  : (1, 2H)
       o_ref  : (Bh, T, (T+1)*H)  lane-dense output slab
    """
    B, T, I = x_ref.shape
    Bh = xh_ref.shape[0]
    H2 = w_ref.shape[1]
    H = H2 // 2
    K = (T + 1) * H
    f32 = jnp.float32

    w = w_ref[...]
    bias = b_ref[...]                                           # (1, 2H)

    # ---------- gates for ALL batches (one 2-D MXU matmul for both layers) ----------
    kh = jnp.dot(x_ref[...].reshape(B * T, I), w,
                 preferred_element_type=f32) + bias             # (B*T, 2H)
    kh = kh.reshape(B, T, H2)
    k_z = kh[:, :, :H]                                          # linear_z(x)
    h_t = kh[:, :, H:]                                          # linear_h(x)
    log_z = -_softplus(-k_z)
    gv = log_z + _log_g(h_t)                                    # (B, T, H)

    # Lane-dense log_values: lv_flat[t, s*H + h] == log_values[t, s, h].
    lg_h0 = _log_g(h0_ref[...])                                 # (B, H)
    lv_flat = jnp.concatenate([lg_h0] + [gv[:, t, :] for t in range(T)],
                              axis=1)                           # (B, (T+1)*H)

    # ---------- a_star only for this program's output-batch slice ----------
    kz = jnp.dot(xh_ref[...].reshape(Bh * T, I), w[:, :H],
                 preferred_element_type=f32) + bias[:, :H]      # (Bh*T, H)
    log_coeffs = -(kz + _softplus(-kz))                         # -softplus(kz)
    # Fold the leading zero column of a_star into the cumsum input (one dense tensor).
    lc_pad = jnp.concatenate(
        [jnp.zeros((Bh * T, 1), f32), log_coeffs], axis=1).reshape(Bh, T, H + 1)

    # Lower-triangular ones: cumsum over t == tril @ x, done on the otherwise idle MXU.
    ri = lax.broadcasted_iota(jnp.int32, (T, T), 0)
    ci = lax.broadcasted_iota(jnp.int32, (T, T), 1)
    tril = jnp.broadcast_to((ri >= ci).astype(f32), (Bh, T, T))
    # 0/1 "repeat" matrix: rep[s, s*H + h] = 1 expands (.., H+1) -> (.., (T+1)*H) lanes.
    er = lax.broadcasted_iota(jnp.int32, (H + 1, K), 0)
    ec = lax.broadcasted_iota(jnp.int32, (H + 1, K), 1)
    rep = ((ec >= er * H) & (ec < (er + 1) * H)).astype(f32)    # (H+1, K)

    a_star = jnp.einsum('bst,btk->bsk', tril, lc_pad,
                        preferred_element_type=f32)             # (Bh, T, H+1)
    ae = jnp.dot(a_star.reshape(Bh * T, H + 1), rep,
                 preferred_element_type=f32).reshape(Bh, T, K)  # lane-expanded a_star

    # ---------- log-space parallel scan (logcumsumexp over t), lane-dense ----------
    d = lv_flat[None, :, :] - ae              # d[b,t,k] = lv[t,k] - a_star[b,t,k//H]
    m = jnp.max(d, axis=1, keepdims=True)                       # (Bh, 1, K)
    e = jnp.exp(d - m)                                          # the only full-size exp
    c = jnp.einsum('bst,btk->bsk', tril, e,
                   preferred_element_type=f32)                  # cumsum over t on MXU

    # Epilogue: exp(a* + m) * c == repeat(exp(a*)) * exp(m) * c  (small exps, VPU muls).
    exp_ae = jnp.dot(jnp.exp(a_star).reshape(Bh * T, H + 1), rep,
                     preferred_element_type=f32).reshape(Bh, T, K)
    o_ref[...] = exp_ae * jnp.exp(m) * c


# ----------------------------------- wrapper ------------------------------------
@jax.jit
def mingru_forward(x, h0, wz, bz, wh, bh):
    B, T, I = x.shape
    H = wz.shape[0]
    # The reference's broadcasting quirk only type-checks for T == H, B in {1, T};
    # this implementation covers the B == T case exercised below.
    assert B == T == H, "reference broadcasting requires B == T == H here"
    n_p = N_PROGRAMS if (B % N_PROGRAMS == 0) else 1
    Bh = B // n_p
    K = (T + 1) * H

    w_cat = jnp.concatenate([wz.T, wh.T], axis=1)               # (I, 2H)
    b_cat = jnp.concatenate([bz, bh]).reshape(1, 2 * H)
    h0_2d = h0.reshape(B, H)

    cost = pl.CostEstimate(   # advisory only
        flops=(2 * B * T * I * 2 * H
               + 2 * B * T * T * (H + 1 + K)
               + 4 * B * T * (H + 1) * K
               + 10 * B * T * K),
        transcendentals=6 * B * T * H + 2 * B * H + B * T * K + B * K + B * T * (H + 1),
        bytes_accessed=4 * (2 * B * T * I + B * H + I * 2 * H + 2 * H + B * T * K),
    )

    out = pl.pallas_call(
        _mingru_kernel,
        out_shape=jax.ShapeDtypeStruct((B, T, K), jnp.float32),
        grid=(n_p,),
        in_specs=[
            pl.BlockSpec((B, T, I), lambda i: (0, 0, 0)),       # x (resident, all programs)
            pl.BlockSpec((Bh, T, I), lambda i: (i, 0, 0)),      # this program's batch slice
            pl.BlockSpec((B, H), lambda i: (0, 0)),             # h0
            pl.BlockSpec((I, 2 * H), lambda i: (0, 0)),         # fused weights
            pl.BlockSpec((1, 2 * H), lambda i: (0, 0)),         # fused bias
        ],
        out_specs=pl.BlockSpec((Bh, T, K), lambda i: (i, 0, 0)),
        compiler_params=pltpu.CompilerParams(
            dimension_semantics=("parallel",),                  # megacore sharding on v7x
            vmem_limit_bytes=32 * 1024 * 1024),
        cost_estimate=cost,
    )(x, x, h0_2d, w_cat, b_cat)

    # Lane-dense slab -> reference shape (B, T, T+1, H): trailing split outside the kernel.
    return out.reshape(B, T, T + 1, H)


# ------------------------------ pure-JAX reference ------------------------------
def _ref_log_g(x):
    return jnp.where(x >= 0.0, jnp.log(jnp.maximum(x, 0.0) + 0.5), -jax.nn.softplus(-x))


def ref_mingru(x, h0, wz, bz, wh, bh):
    hp = jax.lax.Precision.HIGHEST
    k = jnp.einsum('bti,hi->bth', x, wz, precision=hp) + bz
    hh = jnp.einsum('bti,hi->bth', x, wh, precision=hp) + bh
    log_z = -jax.nn.softplus(-k)
    log_coeffs = -jax.nn.softplus(k)
    log_values = jnp.concatenate([_ref_log_g(h0), log_z + _ref_log_g(hh)], axis=1)
    a_star = jnp.pad(jnp.cumsum(log_coeffs, axis=1), ((0, 0), (0, 0), (1, 0)))
    d = log_values - a_star[..., None]
    m = jnp.max(d, axis=1, keepdims=True)
    s = m + jnp.log(jnp.cumsum(jnp.exp(d - m), axis=1))
    return jnp.exp(a_star[..., None] + s)


# ------------------------------------- main --------------------------------------
if __name__ == "__main__":
    # Broadcast in parallel_scan_log (as written) requires T == H and B in {1, T}.
    B, T, I, H = 8, 8, 4, 8
    key = jax.random.PRNGKey(0)
    kx, kh0, k1, k2, k3, k4 = jax.random.split(key, 6)

    x = jax.random.normal(kx, (B, T, I), dtype=jnp.float32)
    h0 = jax.random.normal(kh0, (B, 1, H), dtype=jnp.float32)

    bound = 1.0 / np.sqrt(I)   # torch.nn.Linear default init range
    wz = jax.random.uniform(k1, (H, I), jnp.float32, -bound, bound)
    bz = jax.random.uniform(k2, (H,), jnp.float32, -bound, bound)
    wh = jax.random.uniform(k3, (H, I), jnp.float32, -bound, bound)
    bh = jax.random.uniform(k4, (H,), jnp.float32, -bound, bound)

    h = mingru_forward(x, h0, wz, bz, wh, bh)
    h = jax.block_until_ready(h)

    ref = ref_mingru(x, h0, wz, bz, wh, bh)
    np.testing.assert_allclose(np.asarray(h), np.asarray(ref), rtol=5e-3, atol=5e-3)
    print("KERNEL_OK")
</pallas_src>

<mosaic_0001>
module attributes {stable_mosaic.version = 11 : i64} {
  func.func @_mingru_kernel(%arg0: i32, %arg1: memref<8x8x4xf32, #tpu.memory_space<vmem>>, %arg2: memref<4x8x4xf32, #tpu.memory_space<vmem>>, %arg3: memref<8x8xf32, #tpu.memory_space<vmem>>, %arg4: memref<4x16xf32, #tpu.memory_space<vmem>>, %arg5: memref<1x16xf32, #tpu.memory_space<vmem>>, %arg6: memref<4x8x72xf32, #tpu.memory_space<vmem>>) attributes {dimension_semantics = [#tpu.dimension_semantics<parallel>], iteration_bounds = array<i64: 2>, scalar_prefetch = 0 : i64, scratch_operands = 0 : i64, tpu.core_type = #tpu.core_type<tc>, window_params = [{pipeline_mode = #tpu.pipeline_mode<synchronous>, transform_indices = @transform_0, window_bounds = array<i64: 8, 8, 4>}, {transform_indices = @transform_1, window_bounds = array<i64: 4, 8, 4>}, {pipeline_mode = #tpu.pipeline_mode<synchronous>, transform_indices = @transform_2, window_bounds = array<i64: 8, 8>}, {pipeline_mode = #tpu.pipeline_mode<synchronous>, transform_indices = @transform_3, window_bounds = array<i64: 4, 16>}, {pipeline_mode = #tpu.pipeline_mode<synchronous>, transform_indices = @transform_4, window_bounds = array<i64: 1, 16>}, {transform_indices = @transform_5, window_bounds = array<i64: 4, 8, 72>}]} {
    %c0 = arith.constant 0 : index
    %c0_0 = arith.constant 0 : index
    %0 = vector.load %arg4[%c0, %c0_0] : memref<4x16xf32, #tpu.memory_space<vmem>>, vector<4x16xf32>
    %c0_1 = arith.constant 0 : index
    %c0_2 = arith.constant 0 : index
    %1 = vector.load %arg5[%c0_1, %c0_2] : memref<1x16xf32, #tpu.memory_space<vmem>>, vector<1x16xf32>
    %c0_3 = arith.constant 0 : index
    %c0_4 = arith.constant 0 : index
    %c0_5 = arith.constant 0 : index
    %2 = vector.load %arg1[%c0_3, %c0_4, %c0_5] : memref<8x8x4xf32, #tpu.memory_space<vmem>>, vector<8x8x4xf32>
    %3 = vector.shape_cast %2 : vector<8x8x4xf32> to vector<64x4xf32>
    %cst = arith.constant dense<0.000000e+00> : vector<64x16xf32>
    %4 = tpu.matmul %3, %0, %cst {dimension_numbers = #tpu.dot_dimension_numbers<[1], [0], [0], [1], [0, 0, 1, 1], [], []>} : vector<64x4xf32>, vector<4x16xf32>, vector<64x16xf32> -> vector<64x16xf32>
    %5 = vector.broadcast %1 : vector<1x16xf32> to vector<64x16xf32>
    %6 = arith.addf %4, %5 : vector<64x16xf32>
    %7 = vector.shape_cast %6 : vector<64x16xf32> to vector<8x8x16xf32>
    %8 = vector.extract_strided_slice %7 {offsets = [0, 0, 0], sizes = [8, 8, 8], strides = [1, 1, 1]} : vector<8x8x16xf32> to vector<8x8x8xf32>
    %9 = vector.extract_strided_slice %7 {offsets = [0, 0, 8], sizes = [8, 8, 8], strides = [1, 1, 1]} : vector<8x8x16xf32> to vector<8x8x8xf32>
    %cst_6 = arith.constant 0.000000e+00 : f32
    %10 = vector.broadcast %cst_6 : f32 to vector<8x8x8xf32>
    %11 = arith.subf %10, %8 : vector<8x8x8xf32>
    %cst_7 = arith.constant 0.000000e+00 : f32
    %12 = vector.broadcast %cst_7 : f32 to vector<8x8x8xf32>
    %13 = arith.maximumf %11, %12 : vector<8x8x8xf32>
    %14 = math.absf %11 : vector<8x8x8xf32>
    %cst_8 = arith.constant 0.000000e+00 : f32
    %15 = vector.broadcast %cst_8 : f32 to vector<8x8x8xf32>
    %16 = arith.subf %15, %14 : vector<8x8x8xf32>
    %17 = math.exp %16 : vector<8x8x8xf32>
    %cst_9 = arith.constant 1.000000e+00 : f32
    %18 = vector.broadcast %cst_9 : f32 to vector<8x8x8xf32>
    %19 = arith.addf %18, %17 : vector<8x8x8xf32>
    %20 = math.log %19 : vector<8x8x8xf32>
    %21 = arith.addf %13, %20 : vector<8x8x8xf32>
    %cst_10 = arith.constant 0.000000e+00 : f32
    %22 = vector.broadcast %cst_10 : f32 to vector<8x8x8xf32>
    %23 = arith.subf %22, %21 : vector<8x8x8xf32>
    %cst_11 = arith.constant 0.000000e+00 : f32
    %24 = vector.broadcast %cst_11 : f32 to vector<8x8x8xf32>
    %25 = arith.cmpf oge, %9, %24 : vector<8x8x8xf32>
    %cst_12 = arith.constant 0.000000e+00 : f32
    %26 = vector.broadcast %cst_12 : f32 to vector<8x8x8xf32>
    %27 = arith.maximumf %9, %26 : vector<8x8x8xf32>
    %cst_13 = arith.constant 5.000000e-01 : f32
    %28 = vector.broadcast %cst_13 : f32 to vector<8x8x8xf32>
    %29 = arith.addf %27, %28 : vector<8x8x8xf32>
    %30 = math.log %29 : vector<8x8x8xf32>
    %cst_14 = arith.constant 0.000000e+00 : f32
    %31 = vector.broadcast %cst_14 : f32 to vector<8x8x8xf32>
    %32 = arith.subf %31, %9 : vector<8x8x8xf32>
    %cst_15 = arith.constant 0.000000e+00 : f32
    %33 = vector.broadcast %cst_15 : f32 to vector<8x8x8xf32>
    %34 = arith.maximumf %32, %33 : vector<8x8x8xf32>
    %35 = math.absf %32 : vector<8x8x8xf32>
    %cst_16 = arith.constant 0.000000e+00 : f32
    %36 = vector.broadcast %cst_16 : f32 to vector<8x8x8xf32>
    %37 = arith.subf %36, %35 : vector<8x8x8xf32>
    %38 = math.exp %37 : vector<8x8x8xf32>
    %cst_17 = arith.constant 1.000000e+00 : f32
    %39 = vector.broadcast %cst_17 : f32 to vector<8x8x8xf32>
    %40 = arith.addf %39, %38 : vector<8x8x8xf32>
    %41 = math.log %40 : vector<8x8x8xf32>
    %42 = arith.addf %34, %41 : vector<8x8x8xf32>
    %cst_18 = arith.constant 0.000000e+00 : f32
    %43 = vector.broadcast %cst_18 : f32 to vector<8x8x8xf32>
    %44 = arith.subf %43, %42 : vector<8x8x8xf32>
    %45 = arith.select %25, %30, %44 : vector<8x8x8xi1>, vector<8x8x8xf32>
    %46 = arith.addf %23, %45 : vector<8x8x8xf32>
    %c0_19 = arith.constant 0 : index
    %c0_20 = arith.constant 0 : index
    %47 = vector.load %arg3[%c0_19, %c0_20] : memref<8x8xf32, #tpu.memory_space<vmem>>, vector<8x8xf32>
    %cst_21 = arith.constant 0.000000e+00 : f32
    %48 = vector.broadcast %cst_21 : f32 to vector<8x8xf32>
    %49 = arith.cmpf oge, %47, %48 : vector<8x8xf32>
    %cst_22 = arith.constant 0.000000e+00 : f32
    %50 = vector.broadcast %cst_22 : f32 to vector<8x8xf32>
    %51 = arith.maximumf %47, %50 : vector<8x8xf32>
    %cst_23 = arith.constant 5.000000e-01 : f32
    %52 = vector.broadcast %cst_23 : f32 to vector<8x8xf32>
    %53 = arith.addf %51, %52 : vector<8x8xf32>
    %54 = math.log %53 : vector<8x8xf32>
    %cst_24 = arith.constant 0.000000e+00 : f32
    %55 = vector.broadcast %cst_24 : f32 to vector<8x8xf32>
    %56 = arith.subf %55, %47 : vector<8x8xf32>
    %cst_25 = arith.constant 0.000000e+00 : f32
    %57 = vector.broadcast %cst_25 : f32 to vector<8x8xf32>
    %58 = arith.maximumf %56, %57 : vector<8x8xf32>
    %59 = math.absf %56 : vector<8x8xf32>
    %cst_26 = arith.constant 0.000000e+00 : f32
    %60 = vector.broadcast %cst_26 : f32 to vector<8x8xf32>
    %61 = arith.subf %60, %59 : vector<8x8xf32>
    %62 = math.exp %61 : vector<8x8xf32>
    %cst_27 = arith.constant 1.000000e+00 : f32
    %63 = vector.broadcast %cst_27 : f32 to vector<8x8xf32>
    %64 = arith.addf %63, %62 : vector<8x8xf32>
    %65 = math.log %64 : vector<8x8xf32>
    %66 = arith.addf %58, %65 : vector<8x8xf32>
    %cst_28 = arith.constant 0.000000e+00 : f32
    %67 = vector.broadcast %cst_28 : f32 to vector<8x8xf32>
    %68 = arith.subf %67, %66 : vector<8x8xf32>
    %69 = arith.select %49, %54, %68 : vector<8x8xi1>, vector<8x8xf32>
    %70 = vector.extract_strided_slice %46 {offsets = [0, 0, 0], sizes = [8, 1, 8], strides = [1, 1, 1]} : vector<8x8x8xf32> to vector<8x1x8xf32>
    %71 = vector.shape_cast %70 : vector<8x1x8xf32> to vector<8x8xf32>
    %72 = vector.extract_strided_slice %46 {offsets = [0, 1, 0], sizes = [8, 1, 8], strides = [1, 1, 1]} : vector<8x8x8xf32> to vector<8x1x8xf32>
    %73 = vector.shape_cast %72 : vector<8x1x8xf32> to vector<8x8xf32>
    %74 = vector.extract_strided_slice %46 {offsets = [0, 2, 0], sizes = [8, 1, 8], strides = [1, 1, 1]} : vector<8x8x8xf32> to vector<8x1x8xf32>
    %75 = vector.shape_cast %74 : vector<8x1x8xf32> to vector<8x8xf32>
    %76 = vector.extract_strided_slice %46 {offsets = [0, 3, 0], sizes = [8, 1, 8], strides = [1, 1, 1]} : vector<8x8x8xf32> to vector<8x1x8xf32>
    %77 = vector.shape_cast %76 : vector<8x1x8xf32> to vector<8x8xf32>
    %78 = vector.extract_strided_slice %46 {offsets = [0, 4, 0], sizes = [8, 1, 8], strides = [1, 1, 1]} : vector<8x8x8xf32> to vector<8x1x8xf32>
    %79 = vector.shape_cast %78 : vector<8x1x8xf32> to vector<8x8xf32>
    %80 = vector.extract_strided_slice %46 {offsets = [0, 5, 0], sizes = [8, 1, 8], strides = [1, 1, 1]} : vector<8x8x8xf32> to vector<8x1x8xf32>
    %81 = vector.shape_cast %80 : vector<8x1x8xf32> to vector<8x8xf32>
    %82 = vector.extract_strided_slice %46 {offsets = [0, 6, 0], sizes = [8, 1, 8], strides = [1, 1, 1]} : vector<8x8x8xf32> to vector<8x1x8xf32>
    %83 = vector.shape_cast %82 : vector<8x1x8xf32> to vector<8x8xf32>
    %84 = vector.extract_strided_slice %46 {offsets = [0, 7, 0], sizes = [8, 1, 8], strides = [1, 1, 1]} : vector<8x8x8xf32> to vector<8x1x8xf32>
    %85 = vector.shape_cast %84 : vector<8x1x8xf32> to vector<8x8xf32>
    %86 = tpu.concatenate %69, %71, %73, %75, %77, %79, %81, %83, %85 in 1 : vector<8x8xf32>, vector<8x8xf32>, vector<8x8xf32>, vector<8x8xf32>, vector<8x8xf32>, vector<8x8xf32>, vector<8x8xf32>, vector<8x8xf32>, vector<8x8xf32> -> vector<8x72xf32>
    %c0_29 = arith.constant 0 : index
    %c0_30 = arith.constant 0 : index
    %c0_31 = arith.constant 0 : index
    %87 = vector.load %arg2[%c0_29, %c0_30, %c0_31] : memref<4x8x4xf32, #tpu.memory_space<vmem>>, vector<4x8x4xf32>
    %88 = vector.shape_cast %87 : vector<4x8x4xf32> to vector<32x4xf32>
    %89 = vector.extract_strided_slice %0 {offsets = [0, 0], sizes = [4, 8], strides = [1, 1]} : vector<4x16xf32> to vector<4x8xf32>
    %cst_32 = arith.constant dense<0.000000e+00> : vector<32x8xf32>
    %90 = tpu.matmul %88, %89, %cst_32 {dimension_numbers = #tpu.dot_dimension_numbers<[1], [0], [0], [1], [0, 0, 1, 1], [], []>} : vector<32x4xf32>, vector<4x8xf32>, vector<32x8xf32> -> vector<32x8xf32>
    %91 = vector.extract_strided_slice %1 {offsets = [0, 0], sizes = [1, 8], strides = [1, 1]} : vector<1x16xf32> to vector<1x8xf32>
    %92 = vector.broadcast %91 : vector<1x8xf32> to vector<32x8xf32>
    %93 = arith.addf %90, %92 : vector<32x8xf32>
    %cst_33 = arith.constant 0.000000e+00 : f32
    %94 = vector.broadcast %cst_33 : f32 to vector<32x8xf32>
    %95 = arith.subf %94, %93 : vector<32x8xf32>
    %cst_34 = arith.constant 0.000000e+00 : f32
    %96 = vector.broadcast %cst_34 : f32 to vector<32x8xf32>
    %97 = arith.maximumf %95, %96 : vector<32x8xf32>
    %98 = math.absf %95 : vector<32x8xf32>
    %cst_35 = arith.constant 0.000000e+00 : f32
    %99 = vector.broadcast %cst_35 : f32 to vector<32x8xf32>
    %100 = arith.subf %99, %98 : vector<32x8xf32>
    %101 = math.exp %100 : vector<32x8xf32>
    %cst_36 = arith.constant 1.000000e+00 : f32
    %102 = vector.broadcast %cst_36 : f32 to vector<32x8xf32>
    %103 = arith.addf %102, %101 : vector<32x8xf32>
    %104 = math.log %103 : vector<32x8xf32>
    %105 = arith.addf %97, %104 : vector<32x8xf32>
    %106 = arith.addf %93, %105 : vector<32x8xf32>
    %cst_37 = arith.constant 0.000000e+00 : f32
    %107 = vector.broadcast %cst_37 : f32 to vector<32x8xf32>
    %108 = arith.subf %107, %106 : vector<32x8xf32>
    %cst_38 = arith.constant 0.000000e+00 : f32
    %109 = vector.broadcast %cst_38 : f32 to vector<32x1xf32>
    %110 = tpu.concatenate %109, %108 in 1 : vector<32x1xf32>, vector<32x8xf32> -> vector<32x9xf32>
    %111 = vector.shape_cast %110 : vector<32x9xf32> to vector<4x8x9xf32>
    %112 = tpu.iota {dimensions = array<i32: 0>} : vector<8x8xi32>
    %113 = tpu.iota {dimensions = array<i32: 1>} : vector<8x8xi32>
    %114 = arith.cmpi sge, %112, %113 : vector<8x8xi32>
    %115 = arith.extui %114 : vector<8x8xi1> to vector<8x8xi32>
    %116 = arith.sitofp %115 : vector<8x8xi32> to vector<8x8xf32>
    %117 = vector.shape_cast %116 : vector<8x8xf32> to vector<1x8x8xf32>
    %118 = vector.broadcast %117 : vector<1x8x8xf32> to vector<4x8x8xf32>
    %119 = tpu.iota {dimensions = array<i32: 0>} : vector<9x72xi32>
    %120 = tpu.iota {dimensions = array<i32: 1>} : vector<9x72xi32>
    %c8_i32 = arith.constant 8 : i32
    %121 = vector.broadcast %c8_i32 : i32 to vector<9x72xi32>
    %122 = arith.muli %119, %121 : vector<9x72xi32>
    %123 = arith.cmpi sge, %120, %122 : vector<9x72xi32>
    %c1_i32 = arith.constant 1 : i32
    %124 = vector.broadcast %c1_i32 : i32 to vector<9x72xi32>
    %125 = arith.addi %119, %124 : vector<9x72xi32>
    %c8_i32_39 = arith.constant 8 : i32
    %126 = vector.broadcast %c8_i32_39 : i32 to vector<9x72xi32>
    %127 = arith.muli %125, %126 : vector<9x72xi32>
    %128 = arith.cmpi slt, %120, %127 : vector<9x72xi32>
    %129 = arith.andi %123, %128 : vector<9x72xi1>
    %130 = arith.extui %129 : vector<9x72xi1> to vector<9x72xi32>
    %131 = arith.sitofp %130 : vector<9x72xi32> to vector<9x72xf32>
    "tpu.trace_start"() <{level = 10 : i32, message = "bst,btk->bsk"}> : () -> ()
    %cst_40 = arith.constant dense<0.000000e+00> : vector<4x8x9xf32>
    %132 = tpu.matmul %118, %111, %cst_40 {dimension_numbers = #tpu.dot_dimension_numbers<[2], [1], [1], [2], [0, 0, 0, 1, 1, 2], [0], [0]>} : vector<4x8x8xf32>, vector<4x8x9xf32>, vector<4x8x9xf32> -> vector<4x8x9xf32>
    "tpu.trace_stop"() : () -> ()
    %133 = vector.shape_cast %132 : vector<4x8x9xf32> to vector<32x9xf32>
    %cst_41 = arith.constant dense<0.000000e+00> : vector<32x72xf32>
    %134 = tpu.matmul %133, %131, %cst_41 {dimension_numbers = #tpu.dot_dimension_numbers<[1], [0], [0], [1], [0, 0, 1, 1], [], []>} : vector<32x9xf32>, vector<9x72xf32>, vector<32x72xf32> -> vector<32x72xf32>
    %135 = vector.shape_cast %134 : vector<32x72xf32> to vector<4x8x72xf32>
    %136 = vector.shape_cast %86 : vector<8x72xf32> to vector<1x8x72xf32>
    %137 = vector.broadcast %136 : vector<1x8x72xf32> to vector<4x8x72xf32>
    %138 = arith.subf %137, %135 : vector<4x8x72xf32>
    %cst_42 = arith.constant dense<0xFF800000> : vector<4x72xf32>
    %139 = vector.multi_reduction <maximumf>, %138, %cst_42 [1] : vector<4x8x72xf32> to vector<4x72xf32>
    %140 = vector.shape_cast %139 : vector<4x72xf32> to vector<4x1x72xf32>
    %141 = vector.broadcast %140 : vector<4x1x72xf32> to vector<4x8x72xf32>
    %142 = arith.subf %138, %141 : vector<4x8x72xf32>
    %143 = math.exp %142 : vector<4x8x72xf32>
    "tpu.trace_start"() <{level = 10 : i32, message = "bst,btk->bsk"}> : () -> ()
    %cst_43 = arith.constant dense<0.000000e+00> : vector<4x8x72xf32>
    %144 = tpu.matmul %118, %143, %cst_43 {dimension_numbers = #tpu.dot_dimension_numbers<[2], [1], [1], [2], [0, 0, 0, 1, 1, 2], [0], [0]>} : vector<4x8x8xf32>, vector<4x8x72xf32>, vector<4x8x72xf32> -> vector<4x8x72xf32>
    "tpu.trace_stop"() : () -> ()
    %145 = math.exp %132 : vector<4x8x9xf32>
    %146 = vector.shape_cast %145 : vector<4x8x9xf32> to vector<32x9xf32>
    %cst_44 = arith.constant dense<0.000000e+00> : vector<32x72xf32>
    %147 = tpu.matmul %146, %131, %cst_44 {dimension_numbers = #tpu.dot_dimension_numbers<[1], [0], [0], [1], [0, 0, 1, 1], [], []>} : vector<32x9xf32>, vector<9x72xf32>, vector<32x72xf32> -> vector<32x72xf32>
    %148 = vector.shape_cast %147 : vector<32x72xf32> to vector<4x8x72xf32>
    %149 = math.exp %140 : vector<4x1x72xf32>
    %150 = vector.broadcast %149 : vector<4x1x72xf32> to vector<4x8x72xf32>
    %151 = arith.mulf %148, %150 : vector<4x8x72xf32>
    %152 = arith.mulf %151, %144 : vector<4x8x72xf32>
    %c0_45 = arith.constant 0 : index
    %c0_46 = arith.constant 0 : index
    %c0_47 = arith.constant 0 : index
    %153 = vector.load %arg6[%c0_45, %c0_46, %c0_47] : memref<4x8x72xf32, #tpu.memory_space<vmem>>, vector<4x8x72xf32>
    tpu.vector_store %arg6[%c0_45, %c0_46, %c0_47], %152 {strides = array<i32>} : memref<4x8x72xf32, #tpu.memory_space<vmem>>, vector<4x8x72xf32>,
    return
  }
  func.func @transform_0(%arg0: i32) -> (i32, i32, i32) {
    %c0_i32 = arith.constant 0 : i32
    %c0_i32_0 = arith.constant 0 : i32
    %c0_i32_1 = arith.constant 0 : i32
    %c0_i32_2 = arith.constant 0 : i32
    return %c0_i32, %c0_i32_0, %c0_i32_1 : i32, i32, i32
  }
  func.func @transform_1(%arg0: i32) -> (i32, i32, i32) {
    %c0_i32 = arith.constant 0 : i32
    %c0_i32_0 = arith.constant 0 : i32
    %c0_i32_1 = arith.constant 0 : i32
    return %arg0, %c0_i32, %c0_i32_0 : i32, i32, i32
  }
  func.func @transform_2(%arg0: i32) -> (i32, i32) {
    %c0_i32 = arith.constant 0 : i32
    %c0_i32_0 = arith.constant 0 : i32
    %c0_i32_1 = arith.constant 0 : i32
    return %c0_i32, %c0_i32_0 : i32, i32
  }
  func.func @transform_3(%arg0: i32) -> (i32, i32) {
    %c0_i32 = arith.constant 0 : i32
    %c0_i32_0 = arith.constant 0 : i32
    %c0_i32_1 = arith.constant 0 : i32
    return %c0_i32, %c0_i32_0 : i32, i32
  }
  func.func @transform_4(%arg0: i32) -> (i32, i32) {
    %c0_i32 = arith.constant 0 : i32
    %c0_i32_0 = arith.constant 0 : i32
    %c0_i32_1 = arith.constant 0 : i32
    return %c0_i32, %c0_i32_0 : i32, i32
  }
  func.func @transform_5(%arg0: i32) -> (i32, i32, i32) {
    %c0_i32 = arith.constant 0 : i32
    %c0_i32_0 = arith.constant 0 : i32
    %c0_i32_1 = arith.constant 0 : i32
    return %arg0, %c0_i32, %c0_i32_0 : i32, i32, i32
  }
}

</mosaic_0001>

<llo_original>
// kernel: mingru_forward.1
$region0: #{mingru_forward.1}
  #allocation0 [shape = 'u32[]', space=smem, size = 0x4, offset = 0x4, fixed_abs, tag = 'smem constant byte address 0x4 - core index']
  #allocation1 [shape = 'u32[72,128]{1,0:T(1,128)}', space=vmem, size = 0x9000, scoped, tag = 'internal scratch']
  %s0 = inlined_call_operand.vmem [shape: f32[8,8,4], index: 0, kind: input, shape index: {}, may-alias: {0,1}]
  %s1 = inlined_call_operand.vmem [shape: f32[8,8,4], index: 1, kind: input, shape index: {}, may-alias: {0,1}]
  %s2 = inlined_call_operand.vmem [shape: f32[8,8], index: 2, kind: input, shape index: {}]
  %s3 = inlined_call_operand.vmem [shape: f32[4,16], index: 3, kind: input, shape index: {}]
  %s4 = inlined_call_operand.vmem [shape: f32[1,16], index: 4, kind: input, shape index: {}]
  %s5 = inlined_call_operand.vmem [shape: f32[8,8,72], index: 5, kind: output, shape index: {}]
  %s6 = sld [smem:[#allocation0]]
  $region53: #{mingru_forward.1} parent=0
    _
  %s8 = ssub.s32 1, %s6
  %s9 = scalar_select 0, %s8, %s6
  loop: start=0, step=1, limit=4
  $region2: #{mingru_forward.1} parent=0 // loop_pre_header
    _
  $region3: #{mingru_forward.1} parent=0 // loop_header
    %s11 = sphi 0, %s15
    %p12 = scmp.ge.s32.totalorder %s11, 4
    %s19 = sphi 0, %s19
    %s21 = sphi 0, %s19
    %s22 = sphi 0, %s21
    %s36 = sphi 0, %s22
    %s42 = sphi 0, %s44
    %s45 = sphi 0, %s42
    %s46 = sphi 0, %s45
    %s62 = sphi 0, %s46
    %s66 = sphi 0, %s66
    %s68 = sphi 0, %s66
    %s69 = sphi 0, %s68
    %s83 = sphi 0, %s69
    %s87 = sphi 0, %s87
    %s89 = sphi 0, %s87
    %s90 = sphi 0, %s89
    %s104 = sphi 0, %s90
    %s108 = sphi 0, %s108
    %s110 = sphi 0, %s108
    %s111 = sphi 0, %s110
    %s125 = sphi 0, %s111
    %s131 = sphi 0, %s133
    %s134 = sphi 0, %s131
    %s135 = sphi 0, %s134
    %s151 = sphi 0, %s135
  $region4: #{mingru_forward.1} parent=0 // loop_header_branch
    %14 = sbr.rel (%p12) target = $region8
  $region5: #{mingru_forward.1} parent=0 // loop_body
    %s16 = ssub.s32 %s11, 1
    %s17 = ssub.s32 %s11, 2
    %s18 = sadd.s32 %s11, 1
    %s20 = sadd.s32 %s19, 1
    %p23 = scmp.eq.s32.totalorder %s11, 1
    %p24 = scmp.ne.s32.totalorder %s19, %s21
    %p25 = scmp.eq.s32.totalorder %s11, 0
    %p26 = por %p24, %p25
    %p27 = scmp.ne.s32.totalorder %s19, %s21
    %p28 = scmp.eq.s32.totalorder %s16, 1
    %p29 = por %p27, %p28
    %p30 = scmp.ne.s32.totalorder %s21, %s22
    %p31 = scmp.eq.s32.totalorder %s16, 0
    %p32 = por %p30, %p31
    %p33 = scmp.ne.s32.totalorder %s21, %s22
    %p34 = scmp.eq.s32.totalorder %s17, 1
    %p35 = por %p33, %p34
    %p37 = scmp.ne.s32.totalorder %s22, %s36
    %p38 = scmp.eq.s32.totalorder %s17, 0
    %p39 = por %p37, %p38
    %s40 = ssub.s32 %s11, %s18
    %p41 = scmp.eq.s32.totalorder %s40, 0
    %s43 = sadd.s32 %s42, 1
    %s44 = scalar_select %p41, %s42, %s43
    %p47 = pneg %p41
    %p48 = scmp.eq.s32.totalorder %s11, 1
    %p49 = por %p47, %p48
    %p50 = scmp.ne.s32.totalorder %s42, %s45
    %p51 = scmp.eq.s32.totalorder %s11, 0
    %p52 = por %p50, %p51
    %p53 = scmp.ne.s32.totalorder %s42, %s45
    %p54 = scmp.eq.s32.totalorder %s16, 1
    %p55 = por %p53, %p54
    %p56 = scmp.ne.s32.totalorder %s45, %s46
    %p57 = scmp.eq.s32.totalorder %s16, 0
    %p58 = por %p56, %p57
    %p59 = scmp.ne.s32.totalorder %s45, %s46
    %p60 = scmp.eq.s32.totalorder %s17, 1
    %p61 = por %p59, %p60
    %p63 = scmp.ne.s32.totalorder %s46, %s62
    %p64 = scmp.eq.s32.totalorder %s17, 0
    %p65 = por %p63, %p64
    %s67 = sadd.s32 %s66, 1
    %p70 = scmp.eq.s32.totalorder %s11, 1
    %p71 = scmp.ne.s32.totalorder %s66, %s68
    %p72 = scmp.eq.s32.totalorder %s11, 0
    %p73 = por %p71, %p72
    %p74 = scmp.ne.s32.totalorder %s66, %s68
    %p75 = scmp.eq.s32.totalorder %s16, 1
    %p76 = por %p74, %p75
    %p77 = scmp.ne.s32.totalorder %s68, %s69
    %p78 = scmp.eq.s32.totalorder %s16, 0
    %p79 = por %p77, %p78
    %p80 = scmp.ne.s32.totalorder %s68, %s69
    %p81 = scmp.eq.s32.totalorder %s17, 1
    %p82 = por %p80, %p81
    %p84 = scmp.ne.s32.totalorder %s69, %s83
    %p85 = scmp.eq.s32.totalorder %s17, 0
    %p86 = por %p84, %p85
    %s88 = sadd.s32 %s87, 1
    %p91 = scmp.eq.s32.totalorder %s11, 1
    %p92 = scmp.ne.s32.totalorder %s87, %s89
    %p93 = scmp.eq.s32.totalorder %s11, 0
    %p94 = por %p92, %p93
    %p95 = scmp.ne.s32.totalorder %s87, %s89
    %p96 = scmp.eq.s32.totalorder %s16, 1
    %p97 = por %p95, %p96
    %p98 = scmp.ne.s32.totalorder %s89, %s90
    %p99 = scmp.eq.s32.totalorder %s16, 0
    %p100 = por %p98, %p99
    %p101 = scmp.ne.s32.totalorder %s89, %s90
    %p102 = scmp.eq.s32.totalorder %s17, 1
    %p103 = por %p101, %p102
    %p105 = scmp.ne.s32.totalorder %s90, %s104
    %p106 = scmp.eq.s32.totalorder %s17, 0
    %p107 = por %p105, %p106
    %s109 = sadd.s32 %s108, 1
    %p112 = scmp.eq.s32.totalorder %s11, 1
    %p113 = scmp.ne.s32.totalorder %s108, %s110
    %p114 = scmp.eq.s32.totalorder %s11, 0
    %p115 = por %p113, %p114
    %p116 = scmp.ne.s32.totalorder %s108, %s110
    %p117 = scmp.eq.s32.totalorder %s16, 1
    %p118 = por %p116, %p117
    %p119 = scmp.ne.s32.totalorder %s110, %s111
    %p120 = scmp.eq.s32.totalorder %s16, 0
    %p121 = por %p119, %p120
    %p122 = scmp.ne.s32.totalorder %s110, %s111
    %p123 = scmp.eq.s32.totalorder %s17, 1
    %p124 = por %p122, %p123
    %p126 = scmp.ne.s32.totalorder %s111, %s125
    %p127 = scmp.eq.s32.totalorder %s17, 0
    %p128 = por %p126, %p127
    %s129 = ssub.s32 %s11, %s18
    %p130 = scmp.eq.s32.totalorder %s129, 0
    %s132 = sadd.s32 %s131, 1
    %s133 = scalar_select %p130, %s131, %s132
    %p136 = pneg %p130
    %p137 = scmp.eq.s32.totalorder %s11, 1
    %p138 = por %p136, %p137
    %p139 = scmp.ne.s32.totalorder %s131, %s134
    %p140 = scmp.eq.s32.totalorder %s11, 0
    %p141 = por %p139, %p140
    %p142 = scmp.ne.s32.totalorder %s131, %s134
    %p143 = scmp.eq.s32.totalorder %s16, 1
    %p144 = por %p142, %p143
    %p145 = scmp.ne.s32.totalorder %s134, %s135
    %p146 = scmp.eq.s32.totalorder %s16, 0
    %p147 = por %p145, %p146
    %p148 = scmp.ne.s32.totalorder %s134, %s135
    %p149 = scmp.eq.s32.totalorder %s17, 1
    %p150 = por %p148, %p149
    %p152 = scmp.ne.s32.totalorder %s135, %s151
    %p153 = scmp.eq.s32.totalorder %s17, 0
    %p154 = por %p152, %p153
    %p155 = scmp.le.s32.totalorder 1, %s11
    %p156 = scmp.lt.s32.totalorder %s11, 3
    %p157 = pnand %p155, %p156
    %p158 = pneg %p157
    // Predicated region
    $region9: #{mingru_forward.1} parent=5 // pred_check
      _
    $region10: #{mingru_forward.1} parent=5 // pred_check_branch
      %160 = sbr.rel (%p157) target = $region12
    $region11: #{mingru_forward.1} parent=5 // pred_region
      %s161 = ssub.s32 %s11, 1
      // Predicated region
      $region13: #{mingru_forward.1} parent=11 // pred_check
        %p162 = pneg %p32
      $region14: #{mingru_forward.1} parent=11 // pred_check_branch
        %164 = sbr.rel (%p162) target = $region16
      $region15: #{mingru_forward.1} parent=11 // pred_region
        _
      $region16: #{mingru_forward.1} parent=11 // pred_fallthru
        _
      // Predicated region
      $region17: #{mingru_forward.1} parent=11 // pred_check
        %p165 = pneg %p79
      $region18: #{mingru_forward.1} parent=11 // pred_check_branch
        %167 = sbr.rel (%p165) target = $region20
      $region19: #{mingru_forward.1} parent=11 // pred_region
        _
      $region20: #{mingru_forward.1} parent=11 // pred_fallthru
        _
      // Predicated region
      $region21: #{mingru_forward.1} parent=11 // pred_check
        %p168 = pneg %p100
      $region22: #{mingru_forward.1} parent=11 // pred_check_branch
        %170 = sbr.rel (%p168) target = $region24
      $region23: #{mingru_forward.1} parent=11 // pred_region
        _
      $region24: #{mingru_forward.1} parent=11 // pred_fallthru
        _
      // Predicated region
      $region25: #{mingru_forward.1} parent=11 // pred_check
        %p171 = pneg %p121
      $region26: #{mingru_forward.1} parent=11 // pred_check_branch
        %173 = sbr.rel (%p171) target = $region28
      $region27: #{mingru_forward.1} parent=11 // pred_region
        _
      $region28: #{mingru_forward.1} parent=11 // pred_fallthru
        _
    $region12: #{mingru_forward.1} parent=5 // pred_fallthru
      _
    %p174 = scmp.lt.s32.totalorder %s11, 2
    // Predicated region
    $region29: #{mingru_forward.1} parent=5 // pred_check
      %p175 = pneg %p174
    $region30: #{mingru_forward.1} parent=5 // pred_check_branch
      %177 = sbr.rel (%p175) target = $region32
    $region31: #{mingru_forward.1} parent=5 // pred_region
      // Predicated region
      $region33: #{mingru_forward.1} parent=31 // pred_check
        %p178 = pneg %p52
      $region34: #{mingru_forward.1} parent=31 // pred_check_branch
        %180 = sbr.rel (%p178) target = $region36
      $region35: #{mingru_forward.1} parent=31 // pred_region
        %s181 = smul.u32 4, %s11
        %p182 = scmp.lt.s32.totalorder %s181, 7
        %s183 = scalar_select %p182, %s181, 7
        %s184 = smul.addr %s183, 8
        %s185 = scalar_lea.vmem %s1, %s184
        %s186 = smul.u32 4, %s11
      $region36: #{mingru_forward.1} parent=31 // pred_fallthru
        _
    $region32: #{mingru_forward.1} parent=5 // pred_fallthru
      _
    %p187 = scmp.le.s32.totalorder 1, %s11
    %p188 = scmp.lt.s32.totalorder %s11, 3
    %p189 = pnand %p187, %p188
    %p190 = pneg %p189
    // Predicated region
    $region37: #{mingru_forward.1} parent=5 // pred_check
      _
    $region38: #{mingru_forward.1} parent=5 // pred_check_branch
      %192 = sbr.rel (%p189) target = $region40
    $region39: #{mingru_forward.1} parent=5 // pred_region
      %s193 = ssub.s32 %s11, 1
      %p194 = pneg %p32
      %p195 = pneg %p29
      %s196 = smul.u32 4, %s16
      %p197 = scmp.lt.s32.totalorder %s196, 7
      %s198 = scalar_select %p197, %s196, 7
      %s199 = smul.addr %s198, 8
      %s200 = scalar_lea.vmem %s1, %s199
      %p201 = pneg %p58
      %p202 = pneg %p55
      %p203 = pneg %p79
      %p204 = pneg %p76
      %p205 = pneg %p100
      %p206 = pneg %p97
      %p207 = pneg %p121
      %p208 = pneg %p118
      %p209 = pneg %p147
      %p210 = pneg %p144
      %s211 = smul.u32 4, %s16
      %p212 = scmp.lt.s32.totalorder %s211, 7
      %s213 = scalar_select %p212, %s211, 7
      %s214 = smul.addr %s213, 8
      %s215 = scalar_lea.vmem %s5, %s214
      %s216 = smul.u32 4, %s16
      %p217 = scmp.lt.s32.totalorder %s216, 7
      %s218 = scalar_select %p217, %s216, 7
      %s219 = smul.addr %s218, 8
      %s220 = scalar_lea.vmem %s1, %s219
      %s221 = smul.u32 4, %s16
      %s222 = smul.u32 4, %s16
      %p223 = scmp.lt.s32.totalorder %s222, 7
      %s224 = scalar_select %p223, %s222, 7
      %s225 = smul.addr %s224, 8
      %s226 = scalar_lea.vmem %s5, %s225
      %s227 = smul.u32 4, %s16
      %v228 = vld [vmem:[%s3] sm:$0xf]
      %v229 = vld [vmem:[%s4] sm:$0x1]
      %v230 = vld [vmem:[%s0] sm:$0xff]
      %v231 = vld [vmem:[%s0 + $0x8] sm:$0xff]
      %v232 = vld [vmem:[%s0 + $0x10] sm:$0xff]
      %v233 = vld [vmem:[%s0 + $0x18] sm:$0xff]
      %v234 = vld [vmem:[%s0 + $0x20] sm:$0xff]
      %v235 = vld [vmem:[%s0 + $0x28] sm:$0xff]
      %v236 = vld [vmem:[%s0 + $0x30] sm:$0xff]
      %v237 = vld [vmem:[%s0 + $0x38] sm:$0xff]
      %v239 = vperm.slane %v229, 0
      %vm241 = vcmask 31744
      %v243 = vsel %vm241, %v230, 0
      %v246 = vsel %vm241, %v231, 0
      %v249 = vsel %vm241, %v232, 0
      %v252 = vsel %vm241, %v233, 0
      %v255 = vsel %vm241, %v234, 0
      %v258 = vsel %vm241, %v235, 0
      %v261 = vsel %vm241, %v236, 0
      %v264 = vsel %vm241, %v237, 0
      %vm266 = vcmask 1043456
      %v268 = vsel %vm266, %v228, 0
      %270 = vmatpush.msra.mxu0 0.0
      %271 = vmatpush.msra.mxu0 0.0
      %272 = vmatpush.msra.mxu0 0.0
      %273 = vmatpush.msra.mxu0 0.0
      %274 = vmatpush.msra.mxu0 0.0
      %275 = vmatpush.msra.mxu0 0.0
      %276 = vmatpush.msra.mxu0 0.0
      %277 = vmatpush.msra.mxu0 0.0
      %278 = vmatpush.msra.mxu0 0.0
      %279 = vmatpush.msra.mxu0 0.0
      %280 = vmatpush.msra.mxu0 0.0
      %281 = vmatpush.msra.mxu0 0.0
      %282 = vmatpush.msra.mxu0 0.0
      %283 = vmatpush.msra.mxu0 0.0
      %284 = vmatpush.msra.mxu0 0.0
      %285 = vmatpush.msra.mxu0 %v268
      %286 = vmatmul.f32.gmra.mxu0 %v243
      %v287 = vpop.f32.mrf.mxu0
      %v288 = vadd.f32 %v239, %v287
      %289 = vmatmul.f32.gmra.mxu0 %v246
      %v290 = vpop.f32.mrf.mxu0
      %v291 = vadd.f32 %v239, %v290
      %292 = vmatmul.f32.gmra.mxu0 %v249
      %v293 = vpop.f32.mrf.mxu0
      %v294 = vadd.f32 %v239, %v293
      %295 = vmatmul.f32.gmra.mxu0 %v252
      %v296 = vpop.f32.mrf.mxu0
      %v297 = vadd.f32 %v239, %v296
      %298 = vmatmul.f32.gmra.mxu0 %v255
      %v299 = vpop.f32.mrf.mxu0
      %v300 = vadd.f32 %v239, %v299
      %301 = vmatmul.f32.gmra.mxu0 %v258
      %v302 = vpop.f32.mrf.mxu0
      %v303 = vadd.f32 %v239, %v302
      %304 = vmatmul.f32.gmra.mxu0 %v261
      %v305 = vpop.f32.mrf.mxu0
      %v306 = vadd.f32 %v239, %v305
      %307 = vmatmul.f32.gmra.mxu0 %v264
      %v308 = vpop.f32.mrf.mxu0
      %v309 = vadd.f32 %v239, %v308
      %310 = vdwg.mxu0
      %v311 = vsub.f32 0.0, %v288
      %v312 = vsub.f32 0.0, %v291
      %v313 = vsub.f32 0.0, %v294
      %v314 = vsub.f32 0.0, %v297
      %v315 = vsub.f32 0.0, %v300
      %v316 = vsub.f32 0.0, %v303
      %v317 = vsub.f32 0.0, %v306
      %v318 = vsub.f32 0.0, %v309
      %v319 = vmax.f32 %v311, 0.0
      %v320 = vmax.f32 %v312, 0.0
      %v321 = vmax.f32 %v313, 0.0
      %v322 = vmax.f32 %v314, 0.0
      %v323 = vmax.f32 %v315, 0.0
      %v324 = vmax.f32 %v316, 0.0
      %v325 = vmax.f32 %v317, 0.0
      %v326 = vmax.f32 %v318, 0.0
      %v327 = vand.u32 2147483647, %v311
      %v328 = vand.u32 2147483647, %v312
      %v329 = vand.u32 2147483647, %v313
      %v330 = vand.u32 2147483647, %v314
      %v331 = vand.u32 2147483647, %v315
      %v332 = vand.u32 2147483647, %v316
      %v333 = vand.u32 2147483647, %v317
      %v334 = vand.u32 2147483647, %v318
      %v335 = vsub.f32 0.0, %v327
      %v336 = vsub.f32 0.0, %v328
      %v337 = vsub.f32 0.0, %v329
      %v338 = vsub.f32 0.0, %v330
      %v339 = vsub.f32 0.0, %v331
      %v340 = vsub.f32 0.0, %v332
      %v341 = vsub.f32 0.0, %v333
      %v342 = vsub.f32 0.0, %v334
      %v343 = vmul.f32 %v335, 1.442695
      %v344 = vpow.pop %v343
      %v345 = vmul.f32 %v336, 1.442695
      %v346 = vpow.pop %v345
      %v347 = vmul.f32 %v337, 1.442695
      %v348 = vpow.pop %v347
      %v349 = vmul.f32 %v338, 1.442695
      %v350 = vpow.pop %v349
      %v351 = vmul.f32 %v339, 1.442695
      %v352 = vpow.pop %v351
      %v353 = vmul.f32 %v340, 1.442695
      %v354 = vpow.pop %v353
      %v355 = vmul.f32 %v341, 1.442695
      %v356 = vpow.pop %v355
      %v357 = vmul.f32 %v342, 1.442695
      %v358 = vpow.pop %v357
      %v359 = vadd.f32 %v344, 1.0
      %v360 = vadd.f32 %v346, 1.0
      %v361 = vadd.f32 %v348, 1.0
      %v362 = vadd.f32 %v350, 1.0
      %v363 = vadd.f32 %v352, 1.0
      %v364 = vadd.f32 %v354, 1.0
      %v365 = vadd.f32 %v356, 1.0
      %v366 = vadd.f32 %v358, 1.0
      %v367 = vlog2.pop %v359
      %v368 = vmul.f32 %v367, 0.6931472
      %v369 = vlog2.pop %v360
      %v370 = vmul.f32 %v369, 0.6931472
      %v371 = vlog2.pop %v361
      %v372 = vmul.f32 %v371, 0.6931472
      %v373 = vlog2.pop %v362
      %v374 = vmul.f32 %v373, 0.6931472
      %v375 = vlog2.pop %v363
      %v376 = vmul.f32 %v375, 0.6931472
      %v377 = vlog2.pop %v364
      %v378 = vmul.f32 %v377, 0.6931472
      %v379 = vlog2.pop %v365
      %v380 = vmul.f32 %v379, 0.6931472
      %v381 = vlog2.pop %v366
      %v382 = vmul.f32 %v381, 0.6931472
      %v383 = vadd.f32 %v319, %v368
      %v384 = vadd.f32 %v320, %v370
      %v385 = vadd.f32 %v321, %v372
      %v386 = vadd.f32 %v322, %v374
      %v387 = vadd.f32 %v323, %v376
      %v388 = vadd.f32 %v324, %v378
      %v389 = vadd.f32 %v325, %v380
      %v390 = vadd.f32 %v326, %v382
      %v391 = vsub.f32 0.0, %v383
      %v392 = vsub.f32 0.0, %v384
      %v393 = vsub.f32 0.0, %v385
      %v394 = vsub.f32 0.0, %v386
      %v395 = vsub.f32 0.0, %v387
      %v396 = vsub.f32 0.0, %v388
      %v397 = vsub.f32 0.0, %v389
      %v398 = vsub.f32 0.0, %v390
      %vm399 = vcmp.ge.f32.partialorder %v288, 0.0
      %vm400 = vcmp.ge.f32.partialorder %v291, 0.0
      %vm401 = vcmp.ge.f32.partialorder %v294, 0.0
      %vm402 = vcmp.ge.f32.partialorder %v297, 0.0
      %vm403 = vcmp.ge.f32.partialorder %v300, 0.0
      %vm404 = vcmp.ge.f32.partialorder %v303, 0.0
      %vm405 = vcmp.ge.f32.partialorder %v306, 0.0
      %vm406 = vcmp.ge.f32.partialorder %v309, 0.0
      %v407 = vmax.f32 %v288, 0.0
      %v408 = vmax.f32 %v291, 0.0
      %v409 = vmax.f32 %v294, 0.0
      %v410 = vmax.f32 %v297, 0.0
      %v411 = vmax.f32 %v300, 0.0
      %v412 = vmax.f32 %v303, 0.0
      %v413 = vmax.f32 %v306, 0.0
      %v414 = vmax.f32 %v309, 0.0
      %v415 = vadd.f32 %v407, 0.5
      %v416 = vadd.f32 %v408, 0.5
      %v417 = vadd.f32 %v409, 0.5
      %v418 = vadd.f32 %v410, 0.5
      %v419 = vadd.f32 %v411, 0.5
      %v420 = vadd.f32 %v412, 0.5
      %v421 = vadd.f32 %v413, 0.5
      %v422 = vadd.f32 %v414, 0.5
      %v423 = vlog2.pop %v415
      %v424 = vmul.f32 %v423, 0.6931472
      %v425 = vlog2.pop %v416
      %v426 = vmul.f32 %v425, 0.6931472
      %v427 = vlog2.pop %v417
      %v428 = vmul.f32 %v427, 0.6931472
      %v429 = vlog2.pop %v418
      %v430 = vmul.f32 %v429, 0.6931472
      %v431 = vlog2.pop %v419
      %v432 = vmul.f32 %v431, 0.6931472
      %v433 = vlog2.pop %v420
      %v434 = vmul.f32 %v433, 0.6931472
      %v435 = vlog2.pop %v421
      %v436 = vmul.f32 %v435, 0.6931472
      %v437 = vlog2.pop %v422
      %v438 = vmul.f32 %v437, 0.6931472
      %v439 = vsel %vm399, %v424, %v391
      %v440 = vsel %vm400, %v426, %v392
      %v441 = vsel %vm401, %v428, %v393
      %v442 = vsel %vm402, %v430, %v394
      %v443 = vsel %vm403, %v432, %v395
      %v444 = vsel %vm404, %v434, %v396
      %v445 = vsel %vm405, %v436, %v397
      %v446 = vsel %vm406, %v438, %v398
      %455 = vrot.lane.b32.xlu0 %v439, 120
      %v456 = vpop.permute.xlu0 %455
      %457 = vrot.lane.b32.xlu0 %v440, 120
      %v458 = vpop.permute.xlu0 %457
      %459 = vrot.lane.b32.xlu0 %v441, 120
      %v460 = vpop.permute.xlu0 %459
      %461 = vrot.lane.b32.xlu0 %v442, 120
      %v462 = vpop.permute.xlu0 %461
      %463 = vrot.lane.b32.xlu0 %v443, 120
      %v464 = vpop.permute.xlu0 %463
      %465 = vrot.lane.b32.xlu0 %v444, 120
      %v466 = vpop.permute.xlu0 %465
      %467 = vrot.lane.b32.xlu0 %v445, 120
      %v468 = vpop.permute.xlu0 %467
      %469 = vrot.lane.b32.xlu0 %v446, 120
      %v470 = vpop.permute.xlu0 %469
      %v479 = vadd.f32 %v391, %v456
      %v480 = vadd.f32 %v392, %v458
      %v481 = vadd.f32 %v393, %v460
      %v482 = vadd.f32 %v394, %v462
      %v483 = vadd.f32 %v395, %v464
      %v484 = vadd.f32 %v396, %v466
      %v485 = vadd.f32 %v397, %v468
      %v486 = vadd.f32 %v398, %v470
      %v487 = vld [vmem:[%s2] sm:$0xff]
      %vm488 = vcmp.ge.f32.partialorder %v487, 0.0
      %v489 = vmax.f32 %v487, 0.0
      %v490 = vadd.f32 %v489, 0.5
      %v491 = vlog2.pop %v490
      %v492 = vmul.f32 %v491, 0.6931472
      %v493 = vsub.f32 0.0, %v487
      %v494 = vmax.f32 %v493, 0.0
      %v495 = vand.u32 2147483647, %v493
      %v496 = vsub.f32 0.0, %v495
      %v497 = vmul.f32 %v496, 1.442695
      %v498 = vpow.pop %v497
      %v499 = vadd.f32 %v498, 1.0
      %v500 = vlog2.pop %v499
      %v501 = vmul.f32 %v500, 0.6931472
      %v502 = vadd.f32 %v494, %v501
      %v503 = vsub.f32 0.0, %v502
      %v504 = vsel %vm488, %v492, %v503
      %v513 = vrot.slane %v480, 7
      %vm514 = vcmask 1041409
      %v515 = vsel %vm514, %v513, %v479
      %v516 = vrot.slane %v481, 6
      %vm517 = vcmask 1042434
      %v518 = vsel %vm517, %v516, %v515
      %v519 = vrot.slane %v482, 5
      %vm520 = vcmask 1043459
      %v521 = vsel %vm520, %v519, %v518
      %v522 = vrot.slane %v483, 4
      %vm523 = vcmask 1044484
      %v524 = vsel %vm523, %v522, %v521
      %v525 = vrot.slane %v484, 3
      %vm526 = vcmask 1045509
      %v527 = vsel %vm526, %v525, %v524
      %v528 = vrot.slane %v485, 2
      %vm529 = vcmask 1046534
      %v530 = vsel %vm529, %v528, %v527
      %v531 = vrot.slane %v486, 1
      %vm532 = vcmask 1047559
      %v533 = vsel %vm532, %v531, %v530
      %534 = vrot.lane.b32.xlu0 %v533, 8
      %v535 = vpop.permute.xlu0 %534
      %v537 = vrot.slane %v479, 1
      %v538 = vsel %vm514, %v480, %v537
      %v539 = vrot.slane %v481, 7
      %v540 = vsel %vm517, %v539, %v538
      %v541 = vrot.slane %v482, 6
      %v542 = vsel %vm520, %v541, %v540
      %v543 = vrot.slane %v483, 5
      %v544 = vsel %vm523, %v543, %v542
      %v545 = vrot.slane %v484, 4
      %v546 = vsel %vm526, %v545, %v544
      %v547 = vrot.slane %v485, 3
      %v548 = vsel %vm529, %v547, %v546
      %v549 = vrot.slane %v486, 2
      %v550 = vsel %vm532, %v549, %v548
      %551 = vrot.lane.b32.xlu0 %v550, 16
      %v552 = vpop.permute.xlu0 %551
      %v554 = vrot.slane %v479, 2
      %v555 = vrot.slane %v480, 1
      %v556 = vsel %vm514, %v555, %v554
      %v557 = vsel %vm517, %v481, %v556
      %v558 = vrot.slane %v482, 7
      %v559 = vsel %vm520, %v558, %v557
      %v560 = vrot.slane %v483, 6
      %v561 = vsel %vm523, %v560, %v559
      %v562 = vrot.slane %v484, 5
      %v563 = vsel %vm526, %v562, %v561
      %v564 = vrot.slane %v485, 4
      %v565 = vsel %vm529, %v564, %v563
      %v566 = vrot.slane %v486, 3
      %v567 = vsel %vm532, %v566, %v565
      %568 = vrot.lane.b32.xlu0 %v567, 24
      %v569 = vpop.permute.xlu0 %568
      %v571 = vrot.slane %v479, 3
      %v572 = vrot.slane %v480, 2
      %v573 = vsel %vm514, %v572, %v571
      %v574 = vrot.slane %v481, 1
      %v575 = vsel %vm517, %v574, %v573
      %v576 = vsel %vm520, %v482, %v575
      %v577 = vrot.slane %v483, 7
      %v578 = vsel %vm523, %v577, %v576
      %v579 = vrot.slane %v484, 6
      %v580 = vsel %vm526, %v579, %v578
      %v581 = vrot.slane %v485, 5
      %v582 = vsel %vm529, %v581, %v580
      %v583 = vrot.slane %v486, 4
      %v584 = vsel %vm532, %v583, %v582
      %585 = vrot.lane.b32.xlu0 %v584, 32
      %v586 = vpop.permute.xlu0 %585
      %v588 = vrot.slane %v479, 4
      %v589 = vrot.slane %v480, 3
      %v590 = vsel %vm514, %v589, %v588
      %v591 = vrot.slane %v481, 2
      %v592 = vsel %vm517, %v591, %v590
      %v593 = vrot.slane %v482, 1
      %v594 = vsel %vm520, %v593, %v592
      %v595 = vsel %vm523, %v483, %v594
      %v596 = vrot.slane %v484, 7
      %v597 = vsel %vm526, %v596, %v595
      %v598 = vrot.slane %v485, 6
      %v599 = vsel %vm529, %v598, %v597
      %v600 = vrot.slane %v486, 5
      %v601 = vsel %vm532, %v600, %v599
      %602 = vrot.lane.b32.xlu0 %v601, 40
      %v603 = vpop.permute.xlu0 %602
      %v605 = vrot.slane %v479, 5
      %v606 = vrot.slane %v480, 4
      %v607 = vsel %vm514, %v606, %v605
      %v608 = vrot.slane %v481, 3
      %v609 = vsel %vm517, %v608, %v607
      %v610 = vrot.slane %v482, 2
      %v611 = vsel %vm520, %v610, %v609
      %v612 = vrot.slane %v483, 1
      %v613 = vsel %vm523, %v612, %v611
      %v614 = vsel %vm526, %v484, %v613
      %v615 = vrot.slane %v485, 7
      %v616 = vsel %vm529, %v615, %v614
      %v617 = vrot.slane %v486, 6
      %v618 = vsel %vm532, %v617, %v616
      %619 = vrot.lane.b32.xlu0 %v618, 48
      %v620 = vpop.permute.xlu0 %619
      %v622 = vrot.slane %v479, 6
      %v623 = vrot.slane %v480, 5
      %v624 = vsel %vm514, %v623, %v622
      %v625 = vrot.slane %v481, 4
      %v626 = vsel %vm517, %v625, %v624
      %v627 = vrot.slane %v482, 3
      %v628 = vsel %vm520, %v627, %v626
      %v629 = vrot.slane %v483, 2
      %v630 = vsel %vm523, %v629, %v628
      %v631 = vrot.slane %v484, 1
      %v632 = vsel %vm526, %v631, %v630
      %v633 = vsel %vm529, %v485, %v632
      %v634 = vrot.slane %v486, 7
      %v635 = vsel %vm532, %v634, %v633
      %636 = vrot.lane.b32.xlu0 %v635, 56
      %v637 = vpop.permute.xlu0 %636
      %v639 = vrot.slane %v479, 7
      %v640 = vrot.slane %v480, 6
      %v641 = vsel %vm514, %v640, %v639
      %v642 = vrot.slane %v481, 5
      %v643 = vsel %vm517, %v642, %v641
      %v644 = vrot.slane %v482, 4
      %v645 = vsel %vm520, %v644, %v643
      %v646 = vrot.slane %v483, 3
      %v647 = vsel %vm523, %v646, %v645
      %v648 = vrot.slane %v484, 2
      %v649 = vsel %vm526, %v648, %v647
      %v650 = vrot.slane %v485, 1
      %v651 = vsel %vm529, %v650, %v649
      %v652 = vsel %vm532, %v486, %v651
      %653 = vrot.lane.b32.xlu0 %v652, 64
      %v654 = vpop.permute.xlu0 %653
      %vm656 = vcmask 64512
      %v657 = vsel %vm656, %v504, %v535
      %vm658 = vcmask 130048
      %v659 = vsel %vm658, %v657, %v552
      %vm660 = vcmask 195584
      %v661 = vsel %vm660, %v659, %v569
      %vm662 = vcmask 261120
      %v663 = vsel %vm662, %v661, %v586
      %vm664 = vcmask 326656
      %v665 = vsel %vm664, %v663, %v603
      %vm666 = vcmask 392192
      %v667 = vsel %vm666, %v665, %v620
      %vm668 = vcmask 457728
      %v669 = vsel %vm668, %v667, %v637
      %vm670 = vcmask 523264
      %v671 = vsel %vm670, %v669, %v654
      %v672 = vld [vmem:[%s220] sm:$0xff]
      %v673 = vld [vmem:[%s220 + $0x8] sm:$0xff]
      %v674 = vld [vmem:[%s220 + $0x10] sm:$0xff]
      %v675 = vld [vmem:[%s220 + $0x18] sm:$0xff]
      %v677 = vsel %vm241, %v672, 0
      %v680 = vsel %vm241, %v673, 0
      %v683 = vsel %vm241, %v674, 0
      %v686 = vsel %vm241, %v675, 0
      %688 = vmatpush.msra.mxu0 0.0
      %689 = vmatpush.msra.mxu0 0.0
      %690 = vmatpush.msra.mxu0 0.0
      %691 = vmatpush.msra.mxu0 0.0
      %692 = vmatpush.msra.mxu0 0.0
      %693 = vmatpush.msra.mxu0 0.0
      %694 = vmatpush.msra.mxu0 0.0
      %695 = vmatpush.msra.mxu0 0.0
      %696 = vmatpush.msra.mxu0 0.0
      %697 = vmatpush.msra.mxu0 0.0
      %698 = vmatpush.msra.mxu0 0.0
      %699 = vmatpush.msra.mxu0 0.0
      %700 = vmatpush.msra.mxu0 0.0
      %701 = vmatpush.msra.mxu0 0.0
      %702 = vmatpush.msra.mxu0 0.0
      %703 = vmatpush.msra.mxu0 %v268
      %704 = vmatmul.f32.gmra.mxu0 %v677
      %v705 = vpop.f32.mrf.mxu0
      %v706 = vadd.f32 %v239, %v705
      %707 = vmatmul.f32.gmra.mxu0 %v680
      %v708 = vpop.f32.mrf.mxu0
      %v709 = vadd.f32 %v239, %v708
      %710 = vmatmul.f32.gmra.mxu0 %v683
      %v711 = vpop.f32.mrf.mxu0
      %v712 = vadd.f32 %v239, %v711
      %713 = vmatmul.f32.gmra.mxu0 %v686
      %v714 = vpop.f32.mrf.mxu0
      %v715 = vadd.f32 %v239, %v714
      %716 = vdwg.mxu0
      %v717 = vsub.f32 0.0, %v706
      %v718 = vsub.f32 0.0, %v709
      %v719 = vsub.f32 0.0, %v712
      %v720 = vsub.f32 0.0, %v715
      %v721 = vmax.f32 %v717, 0.0
      %v722 = vmax.f32 %v718, 0.0
      %v723 = vmax.f32 %v719, 0.0
      %v724 = vmax.f32 %v720, 0.0
      %v725 = vand.u32 2147483647, %v717
      %v726 = vand.u32 2147483647, %v718
      %v727 = vand.u32 2147483647, %v719
      %v728 = vand.u32 2147483647, %v720
      %v729 = vsub.f32 0.0, %v725
      %v730 = vsub.f32 0.0, %v726
      %v731 = vsub.f32 0.0, %v727
      %v732 = vsub.f32 0.0, %v728
      %v733 = vmul.f32 %v729, 1.442695
      %v734 = vpow.pop %v733
      %v735 = vmul.f32 %v730, 1.442695
      %v736 = vpow.pop %v735
      %v737 = vmul.f32 %v731, 1.442695
      %v738 = vpow.pop %v737
      %v739 = vmul.f32 %v732, 1.442695
      %v740 = vpow.pop %v739
      %v741 = vadd.f32 %v734, 1.0
      %v742 = vadd.f32 %v736, 1.0
      %v743 = vadd.f32 %v738, 1.0
      %v744 = vadd.f32 %v740, 1.0
      %v745 = vlog2.pop %v741
      %v746 = vmul.f32 %v745, 0.6931472
      %v747 = vlog2.pop %v742
      %v748 = vmul.f32 %v747, 0.6931472
      %v749 = vlog2.pop %v743
      %v750 = vmul.f32 %v749, 0.6931472
      %v751 = vlog2.pop %v744
      %v752 = vmul.f32 %v751, 0.6931472
      %v753 = vadd.f32 %v721, %v746
      %v754 = vadd.f32 %v722, %v748
      %v755 = vadd.f32 %v723, %v750
      %v756 = vadd.f32 %v724, %v752
      %v757 = vadd.f32 %v706, %v753
      %v758 = vadd.f32 %v709, %v754
      %v759 = vadd.f32 %v712, %v755
      %v760 = vadd.f32 %v715, %v756
      %v761 = vsub.f32 0.0, %v757
      %v762 = vsub.f32 0.0, %v758
      %v763 = vsub.f32 0.0, %v759
      %v764 = vsub.f32 0.0, %v760
      %769 = vrot.lane.b32.xlu0 %v761, 1
      %v770 = vpop.permute.xlu0 %769
      %771 = vrot.lane.b32.xlu0 %v762, 1
      %v772 = vpop.permute.xlu0 %771
      %773 = vrot.lane.b32.xlu0 %v763, 1
      %v774 = vpop.permute.xlu0 %773
      %775 = vrot.lane.b32.xlu0 %v764, 1
      %v776 = vpop.permute.xlu0 %775
      %vm781 = vcmask 7168
      %v782 = vsel %vm781, 0.0, %v770
      %v783 = vsel %vm781, 0.0, %v772
      %v784 = vsel %vm781, 0.0, %v774
      %v785 = vsel %vm781, 0.0, %v776
      %v786 = vlaneseq
      %v787 = vshrl.u32 %v786, 7
      %v788 = vlaneseq
      %v789 = vand.u32 %v788, 127
      %vm790 = vcmp.ge.s32.totalorder %v787, %v789
      %v791 = vsel %vm790, 1, 0
      %v792 = vcvt.s32.f32 %v791
      %v793 = vadd.s32 %v787, 8
      %v794 = vmul.u32 %v787, 8
      %v795 = vmul.u32 %v793, 8
      %vm796 = vcmp.ge.s32.totalorder %v789, %v794
      %vm797 = vcmp.ge.s32.totalorder %v789, %v795
      %v798 = vadd.s32 %v787, 1
      %v799 = vadd.s32 %v793, 1
      %v800 = vmul.u32 %v798, 8
      %v801 = vmul.u32 %v799, 8
      %vm802 = vcmp.lt.s32.totalorder %v789, %v800
      %vm803 = vcmp.lt.s32.totalorder %v789, %v801
      %vm804 = vmand %vm796, %vm802
      %vm805 = vmand %vm797, %vm803
      %v806 = vsel %vm804, 1, 0
      %v807 = vsel %vm805, 1, 0
      %v808 = vcvt.s32.f32 %v806
      %v809 = vcvt.s32.f32 %v807
      %v811 = vsel %vm656, %v792, 0
      %813 = vmatpush.msra.mxu0 0.0
      %814 = vmatpush.msra.mxu0 0.0
      %815 = vmatpush.msra.mxu0 0.0
      %816 = vmatpush.msra.mxu0 0.0
      %817 = vmatpush.msra.mxu0 0.0
      %818 = vmatpush.msra.mxu0 0.0
      %819 = vmatpush.msra.mxu0 0.0
      %820 = vmatpush.msra.mxu0 0.0
      %821 = vmatpush.msra.mxu0 0.0
      %822 = vmatpush.msra.mxu0 0.0
      %823 = vmatpush.msra.mxu0 0.0
      %824 = vmatpush.msra.mxu0 0.0
      %825 = vmatpush.msra.mxu0 0.0
      %826 = vmatpush.msra.mxu0 0.0
      %827 = vmatpush.msra.mxu0 0.0
      %828 = vmatpush.msra.mxu0 %v782
      %829 = vmatmul.f32.gmra.mxu0 %v811
      %v830 = vpop.f32.mrf.mxu0
      %v831 = vadd.f32 0.0, %v830
      %832 = vdwg.mxu0
      %833 = vmatpush.msra.mxu0 0.0
      %834 = vmatpush.msra.mxu0 0.0
      %835 = vmatpush.msra.mxu0 0.0
      %836 = vmatpush.msra.mxu0 0.0
      %837 = vmatpush.msra.mxu0 0.0
      %838 = vmatpush.msra.mxu0 0.0
      %839 = vmatpush.msra.mxu0 0.0
      %840 = vmatpush.msra.mxu0 0.0
      %841 = vmatpush.msra.mxu0 0.0
      %842 = vmatpush.msra.mxu0 0.0
      %843 = vmatpush.msra.mxu0 0.0
      %844 = vmatpush.msra.mxu0 0.0
      %845 = vmatpush.msra.mxu0 0.0
      %846 = vmatpush.msra.mxu0 0.0
      %847 = vmatpush.msra.mxu0 0.0
      %848 = vmatpush.msra.mxu0 %v783
      %849 = vmatmul.f32.gmra.mxu0 %v811
      %v850 = vpop.f32.mrf.mxu0
      %v851 = vadd.f32 0.0, %v850
      %852 = vdwg.mxu0
      %853 = vmatpush.msra.mxu0 0.0
      %854 = vmatpush.msra.mxu0 0.0
      %855 = vmatpush.msra.mxu0 0.0
      %856 = vmatpush.msra.mxu0 0.0
      %857 = vmatpush.msra.mxu0 0.0
      %858 = vmatpush.msra.mxu0 0.0
      %859 = vmatpush.msra.mxu0 0.0
      %860 = vmatpush.msra.mxu0 0.0
      %861 = vmatpush.msra.mxu0 0.0
      %862 = vmatpush.msra.mxu0 0.0
      %863 = vmatpush.msra.mxu0 0.0
      %864 = vmatpush.msra.mxu0 0.0
      %865 = vmatpush.msra.mxu0 0.0
      %866 = vmatpush.msra.mxu0 0.0
      %867 = vmatpush.msra.mxu0 0.0
      %868 = vmatpush.msra.mxu0 %v784
      %869 = vmatmul.f32.gmra.mxu0 %v811
      %v870 = vpop.f32.mrf.mxu0
      %v871 = vadd.f32 0.0, %v870
      %872 = vdwg.mxu0
      %873 = vmatpush.msra.mxu0 0.0
      %874 = vmatpush.msra.mxu0 0.0
      %875 = vmatpush.msra.mxu0 0.0
      %876 = vmatpush.msra.mxu0 0.0
      %877 = vmatpush.msra.mxu0 0.0
      %878 = vmatpush.msra.mxu0 0.0
      %879 = vmatpush.msra.mxu0 0.0
      %880 = vmatpush.msra.mxu0 0.0
      %881 = vmatpush.msra.mxu0 0.0
      %882 = vmatpush.msra.mxu0 0.0
      %883 = vmatpush.msra.mxu0 0.0
      %884 = vmatpush.msra.mxu0 0.0
      %885 = vmatpush.msra.mxu0 0.0
      %886 = vmatpush.msra.mxu0 0.0
      %887 = vmatpush.msra.mxu0 0.0
      %888 = vmatpush.msra.mxu0 %v785
      %889 = vmatmul.f32.gmra.mxu0 %v811
      %v890 = vpop.f32.mrf.mxu0
      %v891 = vadd.f32 0.0, %v890
      %892 = vdwg.mxu0
      %vm893 = vcmask 72704
      %v895 = vsel %vm893, %v831, 0
      %v898 = vsel %vm893, %v851, 0
      %v901 = vsel %vm893, %v871, 0
      %v904 = vsel %vm893, %v891, 0
      %vm906 = vcmask 1040384
      %v908 = vsel %vm906, %v809, 0
      %910 = vmatpush.msra.mxu0 0.0
      %911 = vmatpush.msra.mxu0 0.0
      %912 = vmatpush.msra.mxu0 0.0
      %913 = vmatpush.msra.mxu0 0.0
      %914 = vmatpush.msra.mxu0 0.0
      %915 = vmatpush.msra.mxu0 0.0
      %916 = vmatpush.msra.mxu0 0.0
      %917 = vmatpush.msra.mxu0 0.0
      %918 = vmatpush.msra.mxu0 0.0
      %919 = vmatpush.msra.mxu0 0.0
      %920 = vmatpush.msra.mxu0 0.0
      %921 = vmatpush.msra.mxu0 0.0
      %922 = vmatpush.msra.mxu0 0.0
      %923 = vmatpush.msra.mxu0 0.0
      %924 = vmatpush.msra.mxu0 %v908
      %925 = vmatpush.msra.mxu0 %v808
      %926 = vmatmul.f32.gmra.mxu0 %v895
      %v927 = vpop.f32.mrf.mxu0
      %v928 = vadd.f32 0.0, %v927
      %929 = vmatmul.f32.gmra.mxu0 %v898
      %v930 = vpop.f32.mrf.mxu0
      %v931 = vadd.f32 0.0, %v930
      %932 = vmatmul.f32.gmra.mxu0 %v901
      %v933 = vpop.f32.mrf.mxu0
      %v934 = vadd.f32 0.0, %v933
      %935 = vmatmul.f32.gmra.mxu0 %v904
      %v936 = vpop.f32.mrf.mxu0
      %v937 = vadd.f32 0.0, %v936
      %938 = vdwg.mxu0
      %v939 = vsub.f32 %v671, %v928
      %v940 = vsub.f32 %v671, %v931
      %v941 = vsub.f32 %v671, %v934
      %v942 = vsub.f32 %v671, %v937
      %vm943 = vcmask 588800
      %v944 = vsel %vm943, %v939, -inf
      %v945 = vrot.slane %v944, 4
      %v946 = vmax.f32 %v944, %v945
      %v947 = vrot.slane %v946, 2
      %v948 = vmax.f32 %v946, %v947
      %v949 = vrot.slane %v948, 1
      %v950 = vmax.f32 %v948, %v949
      %v951 = vsel %vm943, %v940, -inf
      %v952 = vrot.slane %v951, 4
      %v953 = vmax.f32 %v951, %v952
      %v954 = vrot.slane %v953, 2
      %v955 = vmax.f32 %v953, %v954
      %v956 = vrot.slane %v955, 1
      %v957 = vmax.f32 %v955, %v956
      %v958 = vsel %vm943, %v941, -inf
      %v959 = vrot.slane %v958, 4
      %v960 = vmax.f32 %v958, %v959
      %v961 = vrot.slane %v960, 2
      %v962 = vmax.f32 %v960, %v961
      %v963 = vrot.slane %v962, 1
      %v964 = vmax.f32 %v962, %v963
      %v965 = vsel %vm943, %v942, -inf
      %v966 = vrot.slane %v965, 4
      %v967 = vmax.f32 %v965, %v966
      %v968 = vrot.slane %v967, 2
      %v969 = vmax.f32 %v967, %v968
      %v970 = vrot.slane %v969, 1
      %v971 = vmax.f32 %v969, %v970
      %v972 = vsub.f32 %v939, %v950
      %v973 = vsub.f32 %v940, %v957
      %v974 = vsub.f32 %v941, %v964
      %v975 = vsub.f32 %v942, %v971
      %v976 = vmul.f32 %v972, 1.442695
      %v977 = vpow.pop %v976
      %v978 = vmul.f32 %v973, 1.442695
      %v979 = vpow.pop %v978
      %v980 = vmul.f32 %v974, 1.442695
      %v981 = vpow.pop %v980
      %v982 = vmul.f32 %v975, 1.442695
      %v983 = vpow.pop %v982
      %984 = vmatpush.msra.mxu0 0.0
      %985 = vmatpush.msra.mxu0 0.0
      %986 = vmatpush.msra.mxu0 0.0
      %987 = vmatpush.msra.mxu0 0.0
      %988 = vmatpush.msra.mxu0 0.0
      %989 = vmatpush.msra.mxu0 0.0
      %990 = vmatpush.msra.mxu0 0.0
      %991 = vmatpush.msra.mxu0 0.0
      %992 = vmatpush.msra.mxu0 0.0
      %993 = vmatpush.msra.mxu0 0.0
      %994 = vmatpush.msra.mxu0 0.0
      %995 = vmatpush.msra.mxu0 0.0
      %996 = vmatpush.msra.mxu0 0.0
      %997 = vmatpush.msra.mxu0 0.0
      %998 = vmatpush.msra.mxu0 0.0
      %999 = vmatpush.msra.mxu0 %v977
      %1000 = vmatmul.f32.gmra.mxu0 %v811
      %v1001 = vpop.f32.mrf.mxu0
      %v1002 = vadd.f32 0.0, %v1001
      %1003 = vdwg.mxu0
      %1004 = vmatpush.msra.mxu0 0.0
      %1005 = vmatpush.msra.mxu0 0.0
      %1006 = vmatpush.msra.mxu0 0.0
      %1007 = vmatpush.msra.mxu0 0.0
      %1008 = vmatpush.msra.mxu0 0.0
      %1009 = vmatpush.msra.mxu0 0.0
      %1010 = vmatpush.msra.mxu0 0.0
      %1011 = vmatpush.msra.mxu0 0.0
      %1012 = vmatpush.msra.mxu0 0.0
      %1013 = vmatpush.msra.mxu0 0.0
      %1014 = vmatpush.msra.mxu0 0.0
      %1015 = vmatpush.msra.mxu0 0.0
      %1016 = vmatpush.msra.mxu0 0.0
      %1017 = vmatpush.msra.mxu0 0.0
      %1018 = vmatpush.msra.mxu0 0.0
      %1019 = vmatpush.msra.mxu0 %v979
      %1020 = vmatmul.f32.gmra.mxu0 %v811
      %v1021 = vpop.f32.mrf.mxu0
      %v1022 = vadd.f32 0.0, %v1021
      %1023 = vdwg.mxu0
      %1024 = vmatpush.msra.mxu0 0.0
      %1025 = vmatpush.msra.mxu0 0.0
      %1026 = vmatpush.msra.mxu0 0.0
      %1027 = vmatpush.msra.mxu0 0.0
      %1028 = vmatpush.msra.mxu0 0.0
      %1029 = vmatpush.msra.mxu0 0.0
      %1030 = vmatpush.msra.mxu0 0.0
      %1031 = vmatpush.msra.mxu0 0.0
      %1032 = vmatpush.msra.mxu0 0.0
      %1033 = vmatpush.msra.mxu0 0.0
      %1034 = vmatpush.msra.mxu0 0.0
      %1035 = vmatpush.msra.mxu0 0.0
      %1036 = vmatpush.msra.mxu0 0.0
      %1037 = vmatpush.msra.mxu0 0.0
      %1038 = vmatpush.msra.mxu0 0.0
      %1039 = vmatpush.msra.mxu0 %v981
      %1040 = vmatmul.f32.gmra.mxu0 %v811
      %v1041 = vpop.f32.mrf.mxu0
      %v1042 = vadd.f32 0.0, %v1041
      %1043 = vdwg.mxu0
      %1044 = vmatpush.msra.mxu0 0.0
      %1045 = vmatpush.msra.mxu0 0.0
      %1046 = vmatpush.msra.mxu0 0.0
      %1047 = vmatpush.msra.mxu0 0.0
      %1048 = vmatpush.msra.mxu0 0.0
      %1049 = vmatpush.msra.mxu0 0.0
      %1050 = vmatpush.msra.mxu0 0.0
      %1051 = vmatpush.msra.mxu0 0.0
      %1052 = vmatpush.msra.mxu0 0.0
      %1053 = vmatpush.msra.mxu0 0.0
      %1054 = vmatpush.msra.mxu0 0.0
      %1055 = vmatpush.msra.mxu0 0.0
      %1056 = vmatpush.msra.mxu0 0.0
      %1057 = vmatpush.msra.mxu0 0.0
      %1058 = vmatpush.msra.mxu0 0.0
      %1059 = vmatpush.msra.mxu0 %v983
      %1060 = vmatmul.f32.gmra.mxu0 %v811
      %v1061 = vpop.f32.mrf.mxu0
      %v1062 = vadd.f32 0.0, %v1061
      %1063 = vdwg.mxu0
      %v1064 = vmul.f32 %v831, 1.442695
      %v1065 = vpow.pop %v1064
      %v1066 = vmul.f32 %v851, 1.442695
      %v1067 = vpow.pop %v1066
      %v1068 = vmul.f32 %v871, 1.442695
      %v1069 = vpow.pop %v1068
      %v1070 = vmul.f32 %v891, 1.442695
      %v1071 = vpow.pop %v1070
      %v1073 = vsel %vm893, %v1065, 0
      %v1076 = vsel %vm893, %v1067, 0
      %v1079 = vsel %vm893, %v1069, 0
      %v1082 = vsel %vm893, %v1071, 0
      %1084 = vmatpush.msra.mxu0 0.0
      %1085 = vmatpush.msra.mxu0 0.0
      %1086 = vmatpush.msra.mxu0 0.0
      %1087 = vmatpush.msra.mxu0 0.0
      %1088 = vmatpush.msra.mxu0 0.0
      %1089 = vmatpush.msra.mxu0 0.0
      %1090 = vmatpush.msra.mxu0 0.0
      %1091 = vmatpush.msra.mxu0 0.0
      %1092 = vmatpush.msra.mxu0 0.0
      %1093 = vmatpush.msra.mxu0 0.0
      %1094 = vmatpush.msra.mxu0 0.0
      %1095 = vmatpush.msra.mxu0 0.0
      %1096 = vmatpush.msra.mxu0 0.0
      %1097 = vmatpush.msra.mxu0 0.0
      %1098 = vmatpush.msra.mxu0 %v908
      %1099 = vmatpush.msra.mxu0 %v808
      %1100 = vmatmul.f32.gmra.mxu0 %v1073
      %v1101 = vpop.f32.mrf.mxu0
      %v1102 = vadd.f32 0.0, %v1101
      %1103 = vmatmul.f32.gmra.mxu0 %v1076
      %v1104 = vpop.f32.mrf.mxu0
      %v1105 = vadd.f32 0.0, %v1104
      %1106 = vmatmul.f32.gmra.mxu0 %v1079
      %v1107 = vpop.f32.mrf.mxu0
      %v1108 = vadd.f32 0.0, %v1107
      %1109 = vmatmul.f32.gmra.mxu0 %v1082
      %v1110 = vpop.f32.mrf.mxu0
      %v1111 = vadd.f32 0.0, %v1110
      %1112 = vdwg.mxu0
      %v1113 = vmul.f32 %v950, 1.442695
      %v1114 = vpow.pop %v1113
      %v1115 = vmul.f32 %v957, 1.442695
      %v1116 = vpow.pop %v1115
      %v1117 = vmul.f32 %v964, 1.442695
      %v1118 = vpow.pop %v1117
      %v1119 = vmul.f32 %v971, 1.442695
      %v1120 = vpow.pop %v1119
      %v1121 = vmul.f32 %v1102, %v1114
      %v1122 = vmul.f32 %v1105, %v1116
      %v1123 = vmul.f32 %v1108, %v1118
      %v1124 = vmul.f32 %v1111, %v1120
      %v1125 = vmul.f32 %v1121, %v1002
      %v1126 = vmul.f32 %v1122, %v1022
      %v1127 = vmul.f32 %v1123, %v1042
      %v1128 = vmul.f32 %v1124, %v1062
      %1129 = vst.msk [vmem:[%s226] sm:$0xff] %vm943, %v1125
      %1130 = vst.msk [vmem:[%s226 + $0x8] sm:$0xff] %vm943, %v1126
      %1131 = vst.msk [vmem:[%s226 + $0x10] sm:$0xff] %vm943, %v1127
      %1132 = vst.msk [vmem:[%s226 + $0x18] sm:$0xff] %vm943, %v1128
      %s1133 = smul.u32 4, %s16
      %p1134 = scmp.lt.s32.totalorder %s1133, 7
      %s1135 = scalar_select %p1134, %s1133, 7
      %s1136 = smul.addr %s1135, 8
      %s1137 = scalar_lea.vmem %s5, %s1136
      // Predicated region
      $region41: #{mingru_forward.1} parent=39 // pred_check
        %p1138 = pneg %p144
      $region42: #{mingru_forward.1} parent=39 // pred_check_branch
        %1140 = sbr.rel (%p1138) target = $region44
      $region43: #{mingru_forward.1} parent=39 // pred_region
        %s1141 = smul.u32 4, %s16
      $region44: #{mingru_forward.1} parent=39 // pred_fallthru
        _
    $region40: #{mingru_forward.1} parent=5 // pred_fallthru
      _
    %p1142 = scmp.le.s32.totalorder 2, %s11
    // Predicated region
    $region45: #{mingru_forward.1} parent=5 // pred_check
      %p1143 = pneg %p1142
    $region46: #{mingru_forward.1} parent=5 // pred_check_branch
      %1145 = sbr.rel (%p1143) target = $region48
    $region47: #{mingru_forward.1} parent=5 // pred_region
      %s1146 = ssub.s32 %s11, 2
      // Predicated region
      $region49: #{mingru_forward.1} parent=47 // pred_check
        %p1147 = pneg %p150
      $region50: #{mingru_forward.1} parent=47 // pred_check_branch
        %1149 = sbr.rel (%p1147) target = $region52
      $region51: #{mingru_forward.1} parent=47 // pred_region
        %s1150 = smul.u32 4, %s17
        %p1151 = scmp.lt.s32.totalorder %s1150, 7
        %s1152 = scalar_select %p1151, %s1150, 7
        %s1153 = smul.addr %s1152, 8
        %s1154 = scalar_lea.vmem %s5, %s1153
      $region52: #{mingru_forward.1} parent=47 // pred_fallthru
        _
    $region48: #{mingru_forward.1} parent=5 // pred_fallthru
      _
  $region6: #{mingru_forward.1} parent=0 // loop_footer
    %s15 = sadd.s32 1, %s11
  $region7: #{mingru_forward.1} parent=0 // loop_footer_branch
    %10 = sbr.rel target = $region3
  $region8: #{mingru_forward.1} parent=0 // loop_exit
    _

</llo_original>
